<compile_context>
chip_gen: v5e
topology: v5e:2x2
jax: 0.10.0
libtpu: 0.0.40
codegen_flags: <defaults>
</compile_context>

<pallas_src>
import jax
import jax.numpy as jnp
from jax.experimental import pallas as pl
from jax.experimental.pallas import tpu as pltpu

STATE_SPACE = 4
HIDDEN_SIZE = 64
ROOT_2 = 2.0 ** 0.5


def _round_up(x, m):
    return ((x + m - 1) // m) * m


def _orthogonal(key, rows, cols, std):
    """Deterministic orthogonal init matching torch.nn.init.orthogonal_ semantics."""
    flat_rows, flat_cols = rows, cols
    transpose = flat_rows < flat_cols
    if transpose:
        flat_rows, flat_cols = flat_cols, flat_rows
    a = jax.random.normal(key, (flat_rows, flat_cols), dtype=jnp.float32)
    q, r = jnp.linalg.qr(a)
    d = jnp.sign(jnp.diagonal(r))      # sign correction (same as PyTorch)
    q = q * d[None, :]
    if transpose:
        q = q.T
    return (std * q).astype(jnp.float32)


def layer_init_params(key, in_features, out_features, std=ROOT_2, bias_const=0.0):
    """layer_init: orthogonal weight scaled by std, constant bias.

    Weight kept in PyTorch (out, in) layout; bias stored as a (out, 1) column
    so it broadcasts over the lane (batch) axis in the transposed kernel layout.
    """
    w = _orthogonal(key, out_features, in_features, std)          # (out, in)
    b = jnp.full((out_features, 1), bias_const, dtype=jnp.float32)
    return w, b


def make_critic_params(key, state_size=STATE_SPACE, hidden_size=HIDDEN_SIZE):
    k1, k2, k3 = jax.random.split(key, 3)
    return [
        layer_init_params(k1, state_size, hidden_size, std=ROOT_2),
        layer_init_params(k2, hidden_size, hidden_size, std=ROOT_2),
        layer_init_params(k3, hidden_size, 1, std=1.0),
    ]


def critic_kernel(x_ref, w1_ref, b1_ref, w2_ref, b2_ref, w3_ref, b3_ref, out_ref):
    """Transposed-layout MLP: out = W3 @ tanh(W2 @ tanh(W1 @ X + b1) + b2) + b3.

    X is (state, TB): features on sublanes, batch on lanes (lane-dense);
    hidden activations are (64, TB); output is (1, TB) -> unmasked full-lane
    stores.  tanh goes to the EUP, the matmuls to the MXU.
    """
    x = x_ref[...]                                                   # (S, TB)
    h = jnp.tanh(
        jnp.dot(w1_ref[...], x, preferred_element_type=jnp.float32) + b1_ref[...])
    h = jnp.tanh(
        jnp.dot(w2_ref[...], h, preferred_element_type=jnp.float32) + b2_ref[...])
    out_ref[...] = (
        jnp.dot(w3_ref[...], h, preferred_element_type=jnp.float32) + b3_ref[...]
    ).astype(out_ref.dtype)


def critic_forward(x, params, *, block_b=512):
    """x: (B, ...) float32 -> (B, 1) value estimates.

    Flattens trailing dims (x.view(B, -1)), transposes to the lane-dense
    (state, B) layout, pads the batch to a multiple of the 128-aligned tile,
    and runs a 1-D batch grid with resident weights.
    """
    B = x.shape[0]
    x = x.reshape(B, -1).astype(jnp.float32)          # x.view(B, -1)
    S = x.shape[1]

    (w1, b1), (w2, b2), (w3, b3) = params
    hidden = w1.shape[0]

    # Batch tile: multiple of 128 lanes, capped at block_b.
    tb = min(block_b, _round_up(max(B, 1), 128))
    Bp = _round_up(B, tb)

    xt = x.T                                          # (S, B) lane-dense
    if Bp != B:
        xt = jnp.pad(xt, ((0, 0), (0, Bp - B)))

    n_param_elems = sum(int(w.size) + int(b.size) for w, b in params)
    cost = pl.CostEstimate(
        flops=2 * Bp * (S * hidden + hidden * hidden + hidden * 1),
        transcendentals=Bp * 2 * hidden,
        bytes_accessed=4 * (Bp * S + Bp * 1 + n_param_elems),
    )

    out_t = pl.pallas_call(
        critic_kernel,
        out_shape=jax.ShapeDtypeStruct((1, Bp), jnp.float32),
        grid=(Bp // tb,),
        in_specs=[
            pl.BlockSpec((S, tb), lambda i: (0, i)),          # streamed batch tile
            pl.BlockSpec(w1.shape, lambda i: (0, 0)),         # resident weights
            pl.BlockSpec(b1.shape, lambda i: (0, 0)),
            pl.BlockSpec(w2.shape, lambda i: (0, 0)),
            pl.BlockSpec(b2.shape, lambda i: (0, 0)),
            pl.BlockSpec(w3.shape, lambda i: (0, 0)),
            pl.BlockSpec(b3.shape, lambda i: (0, 0)),
        ],
        out_specs=pl.BlockSpec((1, tb), lambda i: (0, i)),    # lane-dense output
        compiler_params=pltpu.CompilerParams(
            dimension_semantics=("parallel",)),               # megacore on v7x
        cost_estimate=cost,
    )(xt, w1, b1, w2, b2, w3, b3)

    return out_t[:, :B].T                                     # (B, 1)


if __name__ == "__main__":
    key = jax.random.PRNGKey(0)
    pkey, xkey = jax.random.split(key)

    # Deterministic parameters: Linear(4,64)/Tanh/Linear(64,64)/Tanh/Linear(64,1)
    params = make_critic_params(pkey)

    # Small example input: batch of 8 CartPole states, shape (8, 4)
    batch = 8
    x = jax.random.normal(xkey, (batch, STATE_SPACE), dtype=jnp.float32)

    out = critic_forward(x, params)
    out = jax.block_until_ready(out)

    # Reference check in plain JAX (row-major layout, PyTorch convention)
    ref = x.reshape(batch, -1)
    (w1, b1), (w2, b2), (w3, b3) = params
    ref = jnp.tanh(ref @ w1.T + b1.T)
    ref = jnp.tanh(ref @ w2.T + b2.T)
    ref = ref @ w3.T + b3.T

    assert out.shape == (batch, 1), out.shape
    assert jnp.allclose(out, ref, atol=1e-5, rtol=1e-4), (out, ref)

    print("KERNEL_OK")
</pallas_src>

<mosaic_0001>
module attributes {stable_mosaic.version = 11 : i64} {
  func.func @critic_kernel(%arg0: i32, %arg1: memref<4x128xf32, #tpu.memory_space<vmem>>, %arg2: memref<64x4xf32, #tpu.memory_space<vmem>>, %arg3: memref<64x1xf32, #tpu.memory_space<vmem>>, %arg4: memref<64x64xf32, #tpu.memory_space<vmem>>, %arg5: memref<64x1xf32, #tpu.memory_space<vmem>>, %arg6: memref<1x64xf32, #tpu.memory_space<vmem>>, %arg7: memref<1x1xf32, #tpu.memory_space<vmem>>, %arg8: memref<1x128xf32, #tpu.memory_space<vmem>>) attributes {dimension_semantics = [#tpu.dimension_semantics<parallel>], iteration_bounds = array<i64: 1>, scalar_prefetch = 0 : i64, scratch_operands = 0 : i64, tpu.core_type = #tpu.core_type<tc>, window_params = [{transform_indices = @transform_0, window_bounds = array<i64: 4, 128>}, {pipeline_mode = #tpu.pipeline_mode<synchronous>, transform_indices = @transform_1, window_bounds = array<i64: 64, 4>}, {pipeline_mode = #tpu.pipeline_mode<synchronous>, transform_indices = @transform_2, window_bounds = array<i64: 64, 1>}, {pipeline_mode = #tpu.pipeline_mode<synchronous>, transform_indices = @transform_3, window_bounds = array<i64: 64, 64>}, {pipeline_mode = #tpu.pipeline_mode<synchronous>, transform_indices = @transform_4, window_bounds = array<i64: 64, 1>}, {pipeline_mode = #tpu.pipeline_mode<synchronous>, transform_indices = @transform_5, window_bounds = array<i64: 1, 64>}, {pipeline_mode = #tpu.pipeline_mode<synchronous>, transform_indices = @transform_6, window_bounds = array<i64: 1, 1>}, {transform_indices = @transform_7, window_bounds = array<i64: 1, 128>}]} {
    %c0 = arith.constant 0 : index
    %c0_0 = arith.constant 0 : index
    %0 = vector.load %arg1[%c0, %c0_0] : memref<4x128xf32, #tpu.memory_space<vmem>>, vector<4x128xf32>
    %c0_1 = arith.constant 0 : index
    %c0_2 = arith.constant 0 : index
    %1 = vector.load %arg2[%c0_1, %c0_2] : memref<64x4xf32, #tpu.memory_space<vmem>>, vector<64x4xf32>
    %cst = arith.constant dense<0.000000e+00> : vector<64x128xf32>
    %2 = tpu.matmul %1, %0, %cst {dimension_numbers = #tpu.dot_dimension_numbers<[1], [0], [0], [1], [0, 0, 1, 1], [], []>} : vector<64x4xf32>, vector<4x128xf32>, vector<64x128xf32> -> vector<64x128xf32>
    %c0_3 = arith.constant 0 : index
    %c0_4 = arith.constant 0 : index
    %3 = vector.load %arg3[%c0_3, %c0_4] : memref<64x1xf32, #tpu.memory_space<vmem>>, vector<64x1xf32>
    %4 = vector.broadcast %3 : vector<64x1xf32> to vector<64x128xf32>
    %5 = arith.addf %2, %4 : vector<64x128xf32>
    %6 = math.tanh %5 : vector<64x128xf32>
    %c0_5 = arith.constant 0 : index
    %c0_6 = arith.constant 0 : index
    %7 = vector.load %arg4[%c0_5, %c0_6] : memref<64x64xf32, #tpu.memory_space<vmem>>, vector<64x64xf32>
    %cst_7 = arith.constant dense<0.000000e+00> : vector<64x128xf32>
    %8 = tpu.matmul %7, %6, %cst_7 {dimension_numbers = #tpu.dot_dimension_numbers<[1], [0], [0], [1], [0, 0, 1, 1], [], []>} : vector<64x64xf32>, vector<64x128xf32>, vector<64x128xf32> -> vector<64x128xf32>
    %c0_8 = arith.constant 0 : index
    %c0_9 = arith.constant 0 : index
    %9 = vector.load %arg5[%c0_8, %c0_9] : memref<64x1xf32, #tpu.memory_space<vmem>>, vector<64x1xf32>
    %10 = vector.broadcast %9 : vector<64x1xf32> to vector<64x128xf32>
    %11 = arith.addf %8, %10 : vector<64x128xf32>
    %12 = math.tanh %11 : vector<64x128xf32>
    %c0_10 = arith.constant 0 : index
    %c0_11 = arith.constant 0 : index
    %13 = vector.load %arg6[%c0_10, %c0_11] : memref<1x64xf32, #tpu.memory_space<vmem>>, vector<1x64xf32>
    %cst_12 = arith.constant dense<0.000000e+00> : vector<1x128xf32>
    %14 = tpu.matmul %13, %12, %cst_12 {dimension_numbers = #tpu.dot_dimension_numbers<[1], [0], [0], [1], [0, 0, 1, 1], [], []>} : vector<1x64xf32>, vector<64x128xf32>, vector<1x128xf32> -> vector<1x128xf32>
    %c0_13 = arith.constant 0 : index
    %c0_14 = arith.constant 0 : index
    %15 = vector.load %arg7[%c0_13, %c0_14] : memref<1x1xf32, #tpu.memory_space<vmem>>, vector<1x1xf32>
    %16 = vector.broadcast %15 : vector<1x1xf32> to vector<1x128xf32>
    %17 = arith.addf %14, %16 : vector<1x128xf32>
    %c0_15 = arith.constant 0 : index
    %c0_16 = arith.constant 0 : index
    %18 = vector.load %arg8[%c0_15, %c0_16] : memref<1x128xf32, #tpu.memory_space<vmem>>, vector<1x128xf32>
    tpu.vector_store %arg8[%c0_15, %c0_16], %17 {strides = array<i32>} : memref<1x128xf32, #tpu.memory_space<vmem>>, vector<1x128xf32>,
    return
  }
  func.func @transform_0(%arg0: i32) -> (i32, i32) {
    %c0_i32 = arith.constant 0 : i32
    %c0_i32_0 = arith.constant 0 : i32
    return %c0_i32, %arg0 : i32, i32
  }
  func.func @transform_1(%arg0: i32) -> (i32, i32) {
    %c0_i32 = arith.constant 0 : i32
    %c0_i32_0 = arith.constant 0 : i32
    %c0_i32_1 = arith.constant 0 : i32
    return %c0_i32, %c0_i32_0 : i32, i32
  }
  func.func @transform_2(%arg0: i32) -> (i32, i32) {
    %c0_i32 = arith.constant 0 : i32
    %c0_i32_0 = arith.constant 0 : i32
    %c0_i32_1 = arith.constant 0 : i32
    return %c0_i32, %c0_i32_0 : i32, i32
  }
  func.func @transform_3(%arg0: i32) -> (i32, i32) {
    %c0_i32 = arith.constant 0 : i32
    %c0_i32_0 = arith.constant 0 : i32
    %c0_i32_1 = arith.constant 0 : i32
    return %c0_i32, %c0_i32_0 : i32, i32
  }
  func.func @transform_4(%arg0: i32) -> (i32, i32) {
    %c0_i32 = arith.constant 0 : i32
    %c0_i32_0 = arith.constant 0 : i32
    %c0_i32_1 = arith.constant 0 : i32
    return %c0_i32, %c0_i32_0 : i32, i32
  }
  func.func @transform_5(%arg0: i32) -> (i32, i32) {
    %c0_i32 = arith.constant 0 : i32
    %c0_i32_0 = arith.constant 0 : i32
    %c0_i32_1 = arith.constant 0 : i32
    return %c0_i32, %c0_i32_0 : i32, i32
  }
  func.func @transform_6(%arg0: i32) -> (i32, i32) {
    %c0_i32 = arith.constant 0 : i32
    %c0_i32_0 = arith.constant 0 : i32
    %c0_i32_1 = arith.constant 0 : i32
    return %c0_i32, %c0_i32_0 : i32, i32
  }
  func.func @transform_7(%arg0: i32) -> (i32, i32) {
    %c0_i32 = arith.constant 0 : i32
    %c0_i32_0 = arith.constant 0 : i32
    return %c0_i32, %arg0 : i32, i32
  }
}

</mosaic_0001>

<llo_original>
// kernel: tpu_custom_call.1
$region0: #{tpu_custom_call.1}
  #allocation0 [shape = 'u32[]', space=smem, size = 0x4, offset = 0x4, fixed_abs, tag = 'smem constant byte address 0x4 - core index']
  #allocation1 [shape = 'u32[72,128]{1,0:T(1,128)}', space=vmem, size = 0x9000, scoped, tag = 'internal scratch']
  #allocation2 [shape = 'f32[1,1]{1,0:T(1,128)S(1)}', space=vmem, size = 0x200, scoped, tag = 'scoped memory for tpu_custom_call.1']
  %s0 = inlined_call_operand.vmem [shape: f32[4,128], index: 0, kind: input, shape index: {}]
  %s1 = inlined_call_operand.vmem [shape: f32[64,4], index: 1, kind: input, shape index: {}]
  %s2 = inlined_call_operand.vmem [shape: f32[64,1], index: 2, kind: input, shape index: {}]
  %s3 = inlined_call_operand.vmem [shape: f32[64,64], index: 3, kind: input, shape index: {}]
  %s4 = inlined_call_operand.vmem [shape: f32[64,1], index: 4, kind: input, shape index: {}]
  %s5 = inlined_call_operand.vmem [shape: f32[1,64], index: 5, kind: input, shape index: {}]
  %s6 = inlined_call_operand.<no memory space> [shape: f32[1,1], index: 6, kind: input, shape index: {}]
  %s7 = inlined_call_operand.hbm [shape: f32[1,128], index: 7, kind: output, shape index: {}]
  %s8 = sld [smem:[#allocation0]]
  $region38: #{tpu_custom_call.1} parent=0
    _
  %s10 = ssub.s32 1, %s8
  %s11 = scalar_select 0, %s10, %s8
  %v12 = vstv %s6
  %13 = vst [vmem:[#allocation2] sm:$0x1] %v12
  $region1: #{tpu_custom_call.1} parent=0
    #allocation3 [shape = 'u8[512]{0}', space=vmem, size = 0x400, scoped, tag = 'output window, operand 0, single buffered']
    #allocation4 [shape = 's32[1]{0}', space=sflag, size = 0x4, scoped, tag = 'scoped memory for tpu_custom_call.1']
    %14 = vsyncpa [#allocation4], 0
    // Predicated region
    $region2: #{tpu_custom_call.1} parent=1 // pred_check
      _
    $region3: #{tpu_custom_call.1} parent=1 // pred_check_branch
      %16 = sbr.rel (0) target = $region5
    $region4: #{tpu_custom_call.1} parent=1 // pred_region
      _
    $region5: #{tpu_custom_call.1} parent=1 // pred_fallthru
      _
    // Predicated region
    $region6: #{tpu_custom_call.1} parent=1 // pred_check
      _
    $region7: #{tpu_custom_call.1} parent=1 // pred_check_branch
      %18 = sbr.rel (0) target = $region9
    $region8: #{tpu_custom_call.1} parent=1 // pred_region
      _
    $region9: #{tpu_custom_call.1} parent=1 // pred_fallthru
      _
    // Predicated region
    $region10: #{tpu_custom_call.1} parent=1 // pred_check
      _
    $region11: #{tpu_custom_call.1} parent=1 // pred_check_branch
      %20 = sbr.rel (0) target = $region13
    $region12: #{tpu_custom_call.1} parent=1 // pred_region
      _
    $region13: #{tpu_custom_call.1} parent=1 // pred_fallthru
      _
    // Predicated region
    $region14: #{tpu_custom_call.1} parent=1 // pred_check
      _
    $region15: #{tpu_custom_call.1} parent=1 // pred_check_branch
      %22 = sbr.rel (0) target = $region17
    $region16: #{tpu_custom_call.1} parent=1 // pred_region
      _
    $region17: #{tpu_custom_call.1} parent=1 // pred_fallthru
      _
    // Predicated region
    $region18: #{tpu_custom_call.1} parent=1 // pred_check
      _
    $region19: #{tpu_custom_call.1} parent=1 // pred_check_branch
      %24 = sbr.rel (0) target = $region21
    $region20: #{tpu_custom_call.1} parent=1 // pred_region
      _
    $region21: #{tpu_custom_call.1} parent=1 // pred_fallthru
      _
    // Predicated region
    $region22: #{tpu_custom_call.1} parent=1 // pred_check
      _
    $region23: #{tpu_custom_call.1} parent=1 // pred_check_branch
      %26 = sbr.rel (0) target = $region25
    $region24: #{tpu_custom_call.1} parent=1 // pred_region
      _
    $region25: #{tpu_custom_call.1} parent=1 // pred_fallthru
      _
    // Predicated region
    $region26: #{tpu_custom_call.1} parent=1 // pred_check
      _
    $region27: #{tpu_custom_call.1} parent=1 // pred_check_branch
      %28 = sbr.rel (0) target = $region29
    $region28: #{tpu_custom_call.1} parent=1 // pred_region
      _
    $region29: #{tpu_custom_call.1} parent=1 // pred_fallthru
      _
    %v29 = vld [vmem:[%s0] sm:$0xf]
    %v30 = vld [vmem:[%s1] sm:$0xff]
    %v31 = vld [vmem:[%s1 + $0x8] sm:$0xff]
    %v32 = vld [vmem:[%s1 + $0x10] sm:$0xff]
    %v33 = vld [vmem:[%s1 + $0x18] sm:$0xff]
    %v34 = vld [vmem:[%s1 + $0x20] sm:$0xff]
    %v35 = vld [vmem:[%s1 + $0x28] sm:$0xff]
    %v36 = vld [vmem:[%s1 + $0x30] sm:$0xff]
    %v37 = vld [vmem:[%s1 + $0x38] sm:$0xff]
    %v38 = vld [vmem:[%s2] sm:$0xff]
    %v39 = vld [vmem:[%s2 + $0x8] sm:$0xff]
    %v40 = vld [vmem:[%s2 + $0x10] sm:$0xff]
    %v41 = vld [vmem:[%s2 + $0x18] sm:$0xff]
    %v42 = vld [vmem:[%s2 + $0x20] sm:$0xff]
    %v43 = vld [vmem:[%s2 + $0x28] sm:$0xff]
    %v44 = vld [vmem:[%s2 + $0x30] sm:$0xff]
    %v45 = vld [vmem:[%s2 + $0x38] sm:$0xff]
    %47 = vset.pattern.permute.xlu0 0
    %48 = vperm.xlu0 %47, %v38
    %v49 = vpop.permute.xlu0 %48
    %52 = vset.pattern.permute.xlu0 0
    %53 = vperm.xlu0 %52, %v39
    %v54 = vpop.permute.xlu0 %53
    %57 = vset.pattern.permute.xlu0 0
    %58 = vperm.xlu0 %57, %v40
    %v59 = vpop.permute.xlu0 %58
    %62 = vset.pattern.permute.xlu0 0
    %63 = vperm.xlu0 %62, %v41
    %v64 = vpop.permute.xlu0 %63
    %67 = vset.pattern.permute.xlu0 0
    %68 = vperm.xlu0 %67, %v42
    %v69 = vpop.permute.xlu0 %68
    %72 = vset.pattern.permute.xlu0 0
    %73 = vperm.xlu0 %72, %v43
    %v74 = vpop.permute.xlu0 %73
    %77 = vset.pattern.permute.xlu0 0
    %78 = vperm.xlu0 %77, %v44
    %v79 = vpop.permute.xlu0 %78
    %82 = vset.pattern.permute.xlu0 0
    %83 = vperm.xlu0 %82, %v45
    %v84 = vpop.permute.xlu0 %83
    %vm86 = vcmask 31744
    %v88 = vsel %vm86, %v30, 0
    %v91 = vsel %vm86, %v31, 0
    %v94 = vsel %vm86, %v32, 0
    %v97 = vsel %vm86, %v33, 0
    %v100 = vsel %vm86, %v34, 0
    %v103 = vsel %vm86, %v35, 0
    %v106 = vsel %vm86, %v36, 0
    %v109 = vsel %vm86, %v37, 0
    %vm111 = vcmask 1043456
    %v113 = vsel %vm111, %v29, 0
    %115 = vmatpush.msra.mxu0 0.0
    %116 = vmatpush.msra.mxu0 0.0
    %117 = vmatpush.msra.mxu0 0.0
    %118 = vmatpush.msra.mxu0 0.0
    %119 = vmatpush.msra.mxu0 0.0
    %120 = vmatpush.msra.mxu0 0.0
    %121 = vmatpush.msra.mxu0 0.0
    %122 = vmatpush.msra.mxu0 0.0
    %123 = vmatpush.msra.mxu0 0.0
    %124 = vmatpush.msra.mxu0 0.0
    %125 = vmatpush.msra.mxu0 0.0
    %126 = vmatpush.msra.mxu0 0.0
    %127 = vmatpush.msra.mxu0 0.0
    %128 = vmatpush.msra.mxu0 0.0
    %129 = vmatpush.msra.mxu0 0.0
    %130 = vmatpush.msra.mxu0 %v113
    %131 = vmatmul.f32.gmra.mxu0 %v88
    %v132 = vpop.f32.mrf.mxu0
    %v133 = vadd.f32 %v49, %v132
    %134 = vmatmul.f32.gmra.mxu0 %v91
    %v135 = vpop.f32.mrf.mxu0
    %v136 = vadd.f32 %v54, %v135
    %137 = vmatmul.f32.gmra.mxu0 %v94
    %v138 = vpop.f32.mrf.mxu0
    %v139 = vadd.f32 %v59, %v138
    %140 = vmatmul.f32.gmra.mxu0 %v97
    %v141 = vpop.f32.mrf.mxu0
    %v142 = vadd.f32 %v64, %v141
    %143 = vmatmul.f32.gmra.mxu0 %v100
    %v144 = vpop.f32.mrf.mxu0
    %v145 = vadd.f32 %v69, %v144
    %146 = vmatmul.f32.gmra.mxu0 %v103
    %v147 = vpop.f32.mrf.mxu0
    %v148 = vadd.f32 %v74, %v147
    %149 = vmatmul.f32.gmra.mxu0 %v106
    %v150 = vpop.f32.mrf.mxu0
    %v151 = vadd.f32 %v79, %v150
    %152 = vmatmul.f32.gmra.mxu0 %v109
    %v153 = vpop.f32.mrf.mxu0
    %v154 = vadd.f32 %v84, %v153
    %155 = vdwg.mxu0
    %v156 = vtanh.pop %v133
    %v157 = vtanh.pop %v136
    %v158 = vtanh.pop %v139
    %v159 = vtanh.pop %v142
    %v160 = vtanh.pop %v145
    %v161 = vtanh.pop %v148
    %v162 = vtanh.pop %v151
    %v163 = vtanh.pop %v154
    %v164 = vld [vmem:[%s3] sm:$0xff]
    %v165 = vld [vmem:[%s3 + $0x8] sm:$0xff]
    %v166 = vld [vmem:[%s3 + $0x10] sm:$0xff]
    %v167 = vld [vmem:[%s3 + $0x18] sm:$0xff]
    %v168 = vld [vmem:[%s3 + $0x20] sm:$0xff]
    %v169 = vld [vmem:[%s3 + $0x28] sm:$0xff]
    %v170 = vld [vmem:[%s3 + $0x30] sm:$0xff]
    %v171 = vld [vmem:[%s3 + $0x38] sm:$0xff]
    %v172 = vld [vmem:[%s4] sm:$0xff]
    %v173 = vld [vmem:[%s4 + $0x8] sm:$0xff]
    %v174 = vld [vmem:[%s4 + $0x10] sm:$0xff]
    %v175 = vld [vmem:[%s4 + $0x18] sm:$0xff]
    %v176 = vld [vmem:[%s4 + $0x20] sm:$0xff]
    %v177 = vld [vmem:[%s4 + $0x28] sm:$0xff]
    %v178 = vld [vmem:[%s4 + $0x30] sm:$0xff]
    %v179 = vld [vmem:[%s4 + $0x38] sm:$0xff]
    %181 = vset.pattern.permute.xlu0 0
    %182 = vperm.xlu0 %181, %v172
    %v183 = vpop.permute.xlu0 %182
    %186 = vset.pattern.permute.xlu0 0
    %187 = vperm.xlu0 %186, %v173
    %v188 = vpop.permute.xlu0 %187
    %191 = vset.pattern.permute.xlu0 0
    %192 = vperm.xlu0 %191, %v174
    %v193 = vpop.permute.xlu0 %192
    %196 = vset.pattern.permute.xlu0 0
    %197 = vperm.xlu0 %196, %v175
    %v198 = vpop.permute.xlu0 %197
    %201 = vset.pattern.permute.xlu0 0
    %202 = vperm.xlu0 %201, %v176
    %v203 = vpop.permute.xlu0 %202
    %206 = vset.pattern.permute.xlu0 0
    %207 = vperm.xlu0 %206, %v177
    %v208 = vpop.permute.xlu0 %207
    %211 = vset.pattern.permute.xlu0 0
    %212 = vperm.xlu0 %211, %v178
    %v213 = vpop.permute.xlu0 %212
    %216 = vset.pattern.permute.xlu0 0
    %217 = vperm.xlu0 %216, %v179
    %v218 = vpop.permute.xlu0 %217
    %vm220 = vcmask 523264
    %v222 = vsel %vm220, %v164, 0
    %v225 = vsel %vm220, %v165, 0
    %v228 = vsel %vm220, %v166, 0
    %v231 = vsel %vm220, %v167, 0
    %v234 = vsel %vm220, %v168, 0
    %v237 = vsel %vm220, %v169, 0
    %v240 = vsel %vm220, %v170, 0
    %v243 = vsel %vm220, %v171, 0
    %245 = vmatpush.msra.mxu0 0.0
    %246 = vmatpush.msra.mxu0 0.0
    %247 = vmatpush.msra.mxu0 0.0
    %248 = vmatpush.msra.mxu0 0.0
    %249 = vmatpush.msra.mxu0 0.0
    %250 = vmatpush.msra.mxu0 0.0
    %251 = vmatpush.msra.mxu0 0.0
    %252 = vmatpush.msra.mxu0 0.0
    %253 = vmatpush.msra.mxu0 %v163
    %254 = vmatpush.msra.mxu0 %v162
    %255 = vmatpush.msra.mxu0 %v161
    %256 = vmatpush.msra.mxu0 %v160
    %257 = vmatpush.msra.mxu0 %v159
    %258 = vmatpush.msra.mxu0 %v158
    %259 = vmatpush.msra.mxu0 %v157
    %260 = vmatpush.msra.mxu0 %v156
    %261 = vmatmul.f32.gmra.mxu0 %v222
    %v262 = vpop.f32.mrf.mxu0
    %v263 = vadd.f32 %v183, %v262
    %264 = vmatmul.f32.gmra.mxu0 %v225
    %v265 = vpop.f32.mrf.mxu0
    %v266 = vadd.f32 %v188, %v265
    %267 = vmatmul.f32.gmra.mxu0 %v228
    %v268 = vpop.f32.mrf.mxu0
    %v269 = vadd.f32 %v193, %v268
    %270 = vmatmul.f32.gmra.mxu0 %v231
    %v271 = vpop.f32.mrf.mxu0
    %v272 = vadd.f32 %v198, %v271
    %273 = vmatmul.f32.gmra.mxu0 %v234
    %v274 = vpop.f32.mrf.mxu0
    %v275 = vadd.f32 %v203, %v274
    %276 = vmatmul.f32.gmra.mxu0 %v237
    %v277 = vpop.f32.mrf.mxu0
    %v278 = vadd.f32 %v208, %v277
    %279 = vmatmul.f32.gmra.mxu0 %v240
    %v280 = vpop.f32.mrf.mxu0
    %v281 = vadd.f32 %v213, %v280
    %282 = vmatmul.f32.gmra.mxu0 %v243
    %v283 = vpop.f32.mrf.mxu0
    %v284 = vadd.f32 %v218, %v283
    %285 = vdwg.mxu0
    %v286 = vtanh.pop %v263
    %v287 = vtanh.pop %v266
    %v288 = vtanh.pop %v269
    %v289 = vtanh.pop %v272
    %v290 = vtanh.pop %v275
    %v291 = vtanh.pop %v278
    %v292 = vtanh.pop %v281
    %v293 = vtanh.pop %v284
    %v294 = vld [vmem:[%s5] sm:$0x1]
    %v295 = vld [vmem:[#allocation2] sm:$0x1]
    %297 = vset.pattern.permute.xlu0 0
    %298 = vperm.xlu0 %297, %v295
    %v299 = vpop.permute.xlu0 %298
    %v301 = vperm.slane %v299, 0
    %v303 = vsel %vm220, %v294, 0
    %305 = vmatpush.msra.mxu0 0.0
    %306 = vmatpush.msra.mxu0 0.0
    %307 = vmatpush.msra.mxu0 0.0
    %308 = vmatpush.msra.mxu0 0.0
    %309 = vmatpush.msra.mxu0 0.0
    %310 = vmatpush.msra.mxu0 0.0
    %311 = vmatpush.msra.mxu0 0.0
    %312 = vmatpush.msra.mxu0 0.0
    %313 = vmatpush.msra.mxu0 %v293
    %314 = vmatpush.msra.mxu0 %v292
    %315 = vmatpush.msra.mxu0 %v291
    %316 = vmatpush.msra.mxu0 %v290
    %317 = vmatpush.msra.mxu0 %v289
    %318 = vmatpush.msra.mxu0 %v288
    %319 = vmatpush.msra.mxu0 %v287
    %320 = vmatpush.msra.mxu0 %v286
    %321 = vmatmul.f32.gmra.mxu0 %v303
    %v322 = vpop.f32.mrf.mxu0
    %v323 = vadd.f32 %v301, %v322
    %324 = vdwg.mxu0
    %325 = vst [vmem:[#allocation3] sm:$0x1] %v323
    // Predicated region
    $region30: #{tpu_custom_call.1} parent=1 // pred_check
      _
    $region31: #{tpu_custom_call.1} parent=1 // pred_check_branch
      %327 = sbr.rel (0) target = $region33
    $region32: #{tpu_custom_call.1} parent=1 // pred_region
      %329 = vsyncadd [#allocation4], 0
      %s331 = sshll.u32 [#allocation3], 4
      %s332 = int_to_ptr.vmem [resolvable:$true] %s331
      %s333 = sshll.u32 %s7, 4
      %s334 = int_to_ptr.hbm [resolvable:$true] %s333
      %336 = dma.vmem_to_hbm [thread:$0]  %s332, 16, %s334, [#allocation4]
    $region33: #{tpu_custom_call.1} parent=1 // pred_fallthru
      _
    // Predicated region
    $region34: #{tpu_custom_call.1} parent=1 // pred_check
      _
    $region35: #{tpu_custom_call.1} parent=1 // pred_check_branch
      %338 = sbr.rel (0) target = $region37
    $region36: #{tpu_custom_call.1} parent=1 // pred_region
      %340 = dma.done [#allocation4], 16
    $region37: #{tpu_custom_call.1} parent=1 // pred_fallthru
      _
    %341 = vsyncpa [#allocation4], 1

</llo_original>
